<compile_context>
chip_gen: v7x
topology: tpu7x:2x2x1
jax: 0.10.0
libtpu: 0.0.40
codegen_flags: <defaults>
</compile_context>

<pallas_src>
import functools
import math

import numpy as np
import jax
import jax.numpy as jnp
from jax.experimental import pallas as pl
from jax.experimental.pallas import tpu as pltpu

# ----------------------------- model constants ------------------------------
HEADS = 12                      # encoder heads -> conv1 input channels
MIDC = 8                        # mid_conv
C2 = 52                         # conv2 output channels
CH = 64                         # residual-stream channels (52 + 12)
DEPTH = 16                      # residual blocks
HS = WS = 16                    # spatial size after cropping (L - 2)
G = 4                           # width guard columns (>= max dilation 4)
WG = WS + 2 * G                 # 24 : guarded row width
SP = HS * WG                    # 384 = 3 * 128 lanes : guarded spatial size
PAD = 128                       # lane zero padding for vertical tap overflow
PADW = SP + 2 * PAD             # 640
MID_PAD = 16                    # conv2 input channels padded 8 -> 16
K1P = 640                       # conv1 contraction (49*12 = 588) padded
K2 = 49 * MID_PAD               # 784
KR = 9 * CH                     # 576
_BN_EPS = 1e-5
BN_SCALE = 1.0 / math.sqrt(1.0 + _BN_EPS)


# ------------------------- pltpu.roll convention probe -----------------------
_ROLL_SIGN = []


def _probe_kernel(x_ref, o_ref):
    o_ref[...] = pltpu.roll(x_ref[...], 1, axis=1)


def _roll_sign():
    """Returns s in {+1,-1} so that pltpu.roll(x, s*off, axis=1)[i] == x[i+off]
    (for |off| small enough that no wrap-around reaches the window)."""
    if not _ROLL_SIGN:
        x = jnp.broadcast_to(jax.lax.iota(jnp.float32, 128), (8, 128))
        y = pl.pallas_call(
            _probe_kernel,
            out_shape=jax.ShapeDtypeStruct((8, 128), jnp.float32))(x)
        v = float(jax.device_get(y)[0, 0])
        if v == 127.0:       # np.roll convention: roll(x, s)[i] = x[i - s]
            _ROLL_SIGN.append(-1)
        elif v == 1.0:       # opposite convention: roll(x, s)[i] = x[i + s]
            _ROLL_SIGN.append(1)
        else:                # default to the documented np.roll convention
            _ROLL_SIGN.append(-1)
    return _ROLL_SIGN[0]


# --------------------------- in-kernel helpers -------------------------------
def _im2col(x, ksize, dilation, sign):
    """x: (C, SP) f32 with zero guard columns -> (ksize*ksize*C, SP) bf16.

    Tap (i, j) of a same-size dilated conv reads x shifted by
    off = (i*WG + j)*dilation in the flattened guarded layout.  Horizontal
    out-of-range reads land in the zero guard columns, vertical ones in the
    extra PAD lanes, so no per-tap masking is needed.
    """
    c = x.shape[0]
    zpad = jnp.zeros((c, PAD), jnp.float32)
    xp = jnp.concatenate([zpad, x, zpad], axis=1)            # (C, PADW)
    r = (ksize - 1) // 2
    pieces = []
    for i in range(-r, r + 1):
        for j in range(-r, r + 1):
            if i == 0 and j == 0:
                pieces.append(x)
                continue
            off = (i * WG + j) * dilation
            if isinstance(dilation, int):
                shift = (sign * off) % PADW                  # static
            else:
                shift = jnp.mod(sign * off, PADW)            # traced dilation
            rolled = pltpu.roll(xp, shift, axis=1)
            pieces.append(rolled[:, PAD:PAD + SP])           # aligned slice
    return jnp.concatenate(pieces, axis=0).astype(jnp.bfloat16)


def _closeness_kernel(col1_ref, xg_ref, w1_ref, b1_ref, w2_ref, b2_ref,
                      wres_ref, wf_ref, bf_ref, out_ref, act_ref, *, sign):
    f32 = jnp.float32
    depth = wres_ref.shape[0] // 2

    # 1.0 on real pixels, 0.0 on the guard columns of every row.
    lane = jax.lax.broadcasted_iota(jnp.int32, (1, SP), 1)
    wcol = lane % WG
    guard = jnp.where((wcol >= G) & (wcol < G + WS), 1.0, 0.0).astype(f32)

    # ---- conv1 (7x7, 12 -> 8): one MXU matmul on the prebuilt im2col -------
    h = jnp.dot(w1_ref[...], col1_ref[0], preferred_element_type=f32)
    h = h + b1_ref[...]
    # Dropout(p=0.3) is identity in eval mode.
    h = jnp.maximum(h, 0.0) * guard                                   # (8, SP)

    # ---- conv2 (7x7, 8 -> 52, output rows padded to 64) --------------------
    h = jnp.concatenate(
        [h, jnp.zeros((MID_PAD - MIDC, SP), f32)], axis=0)            # (16, SP)
    col = _im2col(h, 7, 1, sign)                                      # (784, SP)
    h = jnp.dot(w2_ref[...], col, preferred_element_type=f32) + b2_ref[...]
    # torch.cat((conv2_out, attn), ch): xg already holds the attention map in
    # rows 52..63 (zeros elsewhere), so the concat becomes a plain add.
    act_ref[...] = h * guard + xg_ref[0]                              # (64, SP)

    # ---- 16 pre-activation residual blocks, dilation cycling 1, 2, 4 -------
    def block(jj, carry):
        ident = act_ref[...]
        dil = jnp.int32(1) << (jj % 3)
        # bn1 (eval mode, default affine + running stats) + relu1
        hb = jnp.maximum(ident * BN_SCALE, 0.0)
        col_a = _im2col(hb, 3, 1, sign)                               # (576, SP)
        hh = jnp.dot(wres_ref[2 * jj], col_a, preferred_element_type=f32)
        # Dropout(p=0.4) identity in eval mode; relu2; re-zero guard columns.
        hb = jnp.maximum(hh, 0.0) * guard
        col_b = _im2col(hb, 3, dil, sign)
        hh = jnp.dot(wres_ref[2 * jj + 1], col_b, preferred_element_type=f32)
        act_ref[...] = hh * guard + ident                             # residual
        return carry

    jax.lax.fori_loop(0, depth, block, 0)

    # ---- final conv (3x3, 64 -> 1) + bias ----------------------------------
    col_f = _im2col(act_ref[...], 3, 1, sign)
    y = jnp.dot(wf_ref[...], col_f, preferred_element_type=f32) + bf_ref[...]
    out_ref[0] = y                                                    # (1, SP)


# ------------------------------ forward pass ---------------------------------
def forward_pallas(params, final_attn):
    # TODO(synk): the frozen external `sentence_encoder` transformer is not
    # re-implemented; the module's own compute starts from its attention map.
    x = final_attn[:, :, 1:-1, 1:-1].astype(jnp.float32)        # (B, 12, 16, 16)
    B = x.shape[0]
    assert x.shape[1:] == (HEADS, HS, WS)

    # Attention channels embedded at rows 52..63 of the 64-channel stream,
    # stored in the guarded row layout (zero guard columns).
    xg = jnp.pad(x, ((0, 0), (0, 0), (0, 0), (G, G))).reshape(B, HEADS, SP)
    xg64 = jnp.concatenate(
        [jnp.zeros((B, C2, SP), jnp.float32), xg], axis=1)      # (B, 64, SP)

    # im2col of the network input for conv1 (the only conv whose input does not
    # come from inside the kernel): 49 taps, guarded layout, K padded to 640.
    xp = jnp.pad(x, ((0, 0), (0, 0), (3, 3), (3, 3)))
    taps = []
    for kh in range(7):
        for kw in range(7):
            t = xp[:, :, kh:kh + HS, kw:kw + WS]
            t = jnp.pad(t, ((0, 0), (0, 0), (0, 0), (G, G)))
            taps.append(t.reshape(B, HEADS, SP))
    col1 = jnp.concatenate(taps, axis=1)                        # (B, 588, SP)
    col1 = jnp.pad(col1, ((0, 0), (0, K1P - 49 * HEADS), (0, 0)))
    col1 = col1.astype(jnp.bfloat16)

    # Weights flattened to (Cout, K) matmul form, bf16 operands / f32 accum.
    w1 = params['conv1_w'].transpose(0, 2, 3, 1).reshape(MIDC, 49 * HEADS)
    w1 = jnp.pad(w1, ((0, 0), (0, K1P - 49 * HEADS))).astype(jnp.bfloat16)
    b1 = params['conv1_b'].reshape(MIDC, 1).astype(jnp.float32)
    w2 = params['conv2_w'].transpose(0, 2, 3, 1)                # (52, 7, 7, 8)
    w2 = jnp.pad(w2, ((0, CH - C2), (0, 0), (0, 0), (0, MID_PAD - MIDC)))
    w2 = w2.reshape(CH, K2).astype(jnp.bfloat16)                # (64, 784)
    b2 = jnp.pad(params['conv2_b'], (0, CH - C2)).reshape(CH, 1)
    b2 = b2.astype(jnp.float32)
    wres = jnp.stack(
        [params[f'res{i}_conv{c}_w'].transpose(0, 2, 3, 1).reshape(CH, KR)
         for i in range(DEPTH) for c in (1, 2)],
        axis=0).astype(jnp.bfloat16)                            # (32, 64, 576)
    wf = params['final_w'].transpose(0, 2, 3, 1).reshape(1, KR)
    wf = wf.astype(jnp.bfloat16)
    bf = params['final_b'].reshape(1, 1).astype(jnp.float32)

    kernel = functools.partial(_closeness_kernel, sign=_roll_sign())
    out = pl.pallas_call(
        kernel,
        grid=(B,),
        in_specs=[
            pl.BlockSpec((1, K1P, SP), lambda b: (b, 0, 0)),          # col1
            pl.BlockSpec((1, CH, SP), lambda b: (b, 0, 0)),           # xg64
            pl.BlockSpec((MIDC, K1P), lambda b: (0, 0)),              # w1
            pl.BlockSpec((MIDC, 1), lambda b: (0, 0)),                # b1
            pl.BlockSpec((CH, K2), lambda b: (0, 0)),                 # w2
            pl.BlockSpec((CH, 1), lambda b: (0, 0)),                  # b2
            pl.BlockSpec((2 * DEPTH, CH, KR), lambda b: (0, 0, 0)),   # wres
            pl.BlockSpec((1, KR), lambda b: (0, 0)),                  # wf
            pl.BlockSpec((1, 1), lambda b: (0, 0)),                   # bf
        ],
        out_specs=pl.BlockSpec((1, 1, SP), lambda b: (b, 0, 0)),
        out_shape=jax.ShapeDtypeStruct((B, 1, SP), jnp.float32),
        scratch_shapes=[pltpu.VMEM((CH, SP), jnp.float32)],
        compiler_params=pltpu.CompilerParams(
            dimension_semantics=("parallel",),     # batch -> both TCs on v7x
            vmem_limit_bytes=32 * 1024 * 1024),
    )(col1, xg64, w1, b1, w2, b2, wres, wf, bf)

    y = out.reshape(B, 1, HS, WG)[:, :, :, G:G + WS]            # drop guards
    return y + jnp.swapaxes(y, 2, 3)                            # out + out^T


# ------------------------------ parameters -----------------------------------
def make_params(key):
    """Kaiming-style init matching the PyTorch module's parameter shapes.

    Conv weights are rounded once through bf16 so the Pallas kernel (bf16 MXU
    operands, f32 accumulation) and the f32 reference use identical values.
    """
    keys = jax.random.split(key, 2 * DEPTH + 8)
    ki = iter(range(len(keys)))

    def kaiming(shape):
        fan_in = shape[1] * shape[2] * shape[3]
        w = jnp.sqrt(2.0 / fan_in) * jax.random.normal(
            keys[next(ki)], shape, jnp.float32)
        return w.astype(jnp.bfloat16).astype(jnp.float32)

    def bias(shape):
        return 0.02 * jax.random.normal(keys[next(ki)], shape, jnp.float32)

    p = {}
    p['conv1_w'] = kaiming((MIDC, HEADS, 7, 7))
    p['conv1_b'] = bias((MIDC,))
    p['conv2_w'] = kaiming((C2, MIDC, 7, 7))
    p['conv2_b'] = bias((C2,))
    for i in range(DEPTH):
        p[f'res{i}_conv1_w'] = kaiming((CH, CH, 3, 3))   # bias=False
        p[f'res{i}_conv2_w'] = kaiming((CH, CH, 3, 3))   # bias=False
    p['final_w'] = kaiming((1, CH, 3, 3))
    p['final_b'] = bias((1,))
    return p


# --------------------------- pure-JAX reference -------------------------------
def _conv_ref(x, w, bias=None, padding=0, dilation=1):
    out = jax.lax.conv_general_dilated(
        x, w, window_strides=(1, 1),
        padding=[(padding, padding), (padding, padding)],
        rhs_dilation=(dilation, dilation),
        dimension_numbers=('NCHW', 'OIHW', 'NCHW'),
        precision=jax.lax.Precision.HIGHEST)
    if bias is not None:
        out = out + bias.reshape(1, -1, 1, 1)
    return out


def forward_reference(params, final_attn):
    x = final_attn[:, :, 1:-1, 1:-1].astype(jnp.float32)
    out = _conv_ref(x, params['conv1_w'], params['conv1_b'], padding=3)
    out = jnp.maximum(out, 0.0)
    out = _conv_ref(out, params['conv2_w'], params['conv2_b'], padding=3)
    out = jnp.concatenate([out, x], axis=1)
    for i in range(DEPTH):
        d = 2 ** (i % 3)
        identity = out
        h = jnp.maximum(out * BN_SCALE, 0.0)
        h = _conv_ref(h, params[f'res{i}_conv1_w'], padding=1)
        h = jnp.maximum(h, 0.0)
        out = _conv_ref(h, params[f'res{i}_conv2_w'],
                        padding=d, dilation=d) + identity
    out = _conv_ref(out, params['final_w'], params['final_b'], padding=1)
    return out + jnp.swapaxes(out, 2, 3)


# ----------------------------------- main -------------------------------------
if __name__ == "__main__":
    key = jax.random.PRNGKey(0)
    k_param, k_x = jax.random.split(key)

    params = make_params(k_param)

    # Encoder's last-layer attention map: (B, heads=12, L, L) with L = 16 + 2.
    final_attn = jax.nn.softmax(
        jax.random.normal(k_x, (2, HEADS, HS + 2, WS + 2), jnp.float32),
        axis=-1)

    _roll_sign()                                   # one-time hardware probe

    forward = jax.jit(forward_pallas)
    out = jax.block_until_ready(forward(params, final_attn))
    assert out.shape == (2, 1, HS, WS), out.shape

    ref = np.asarray(forward_reference(params, final_attn))
    got = np.asarray(out)

    # bf16 MXU operands vs. f32 reference through a 34-conv residual stack:
    # validate with a scale-aware max-error bound (outputs are zero-mean, so a
    # per-element rtol is not meaningful near zero crossings).
    scale = float(np.max(np.abs(ref)))
    err = float(np.max(np.abs(got - ref)))
    assert err <= 5e-2 * scale, (err, scale)

    print("KERNEL_OK")
</pallas_src>

<mosaic_0001>
module attributes {stable_mosaic.version = 11 : i64} {
  func.func @_probe_kernel(%arg0: memref<8x128xf32, #tpu.memory_space<vmem>>, %arg1: memref<8x128xf32, #tpu.memory_space<vmem>>) attributes {dimension_semantics = [], scalar_prefetch = 0 : i64, scratch_operands = 0 : i64, tpu.core_type = #tpu.core_type<tc>} {
    %c0 = arith.constant 0 : index
    %c0_0 = arith.constant 0 : index
    %0 = vector.load %arg0[%c0, %c0_0] : memref<8x128xf32, #tpu.memory_space<vmem>>, vector<8x128xf32>
    %c1_i32 = arith.constant 1 : i32
    %1 = tpu.dynamic_rotate %0 by %c1_i32 dim 1 : vector<8x128xf32>, i32 -> vector<8x128xf32>
    %c0_1 = arith.constant 0 : index
    %c0_2 = arith.constant 0 : index
    %2 = vector.load %arg1[%c0_1, %c0_2] : memref<8x128xf32, #tpu.memory_space<vmem>>, vector<8x128xf32>
    tpu.vector_store %arg1[%c0_1, %c0_2], %1 {strides = array<i32>} : memref<8x128xf32, #tpu.memory_space<vmem>>, vector<8x128xf32>,
    return
  }
}

</mosaic_0001>

<llo_original>
// kernel: tpu_custom_call.1
$region0: #{tpu_custom_call.1}
  #allocation0 [shape = 'u32[]', space=smem, size = 0x4, offset = 0x4, fixed_abs, tag = 'smem constant byte address 0x4 - core index']
  #allocation1 [shape = 'u32[144,128]{1,0:T(1,128)}', space=vmem, size = 0x12000, scoped, tag = 'internal scratch']
  %s0 = inlined_call_operand.hbm [shape: f32[8,128], index: 0, kind: input, shape index: {}]
  %s1 = inlined_call_operand.hbm [shape: f32[8,128], index: 1, kind: output, shape index: {}]
  %s2 = sld [smem:[#allocation0]]
  $region18: #{tpu_custom_call.1} parent=0
    _
  %s4 = ssub.s32 1, %s2
  %s5 = scalar_select 0, %s4, %s2
  $region1: #{tpu_custom_call.1} parent=0
    #allocation2 [shape = 'u8[4096]{0}', space=vmem, size = 0x1000, scoped, tag = 'input window, operand 0, single buffered']
    #allocation3 [shape = 's32[1]{0}', space=sflag, size = 0x4, scoped, tag = 'scoped memory for tpu_custom_call.1']
    #allocation4 [shape = 's32[1]{0}', space=sflag, size = 0x4, scoped, tag = 'scoped memory for tpu_custom_call.1']
    #allocation5 [shape = 'u8[4096]{0}', space=vmem, size = 0x1000, scoped, tag = 'output window, operand 0, single buffered']
    %6 = vsyncpa [#allocation3], 0
    %7 = vsyncpa [#allocation4], 0
    // Predicated region
    $region2: #{tpu_custom_call.1} parent=1 // pred_check
      _
    $region3: #{tpu_custom_call.1} parent=1 // pred_check_branch
      %9 = sbr.rel (0) target = $region5
    $region4: #{tpu_custom_call.1} parent=1 // pred_region
      %s11 = ssub.s32 128, 128
      %12 = vsyncadd [#allocation3], %s11
      %s14 = sshll.u32 [#allocation2], 4
      %s15 = int_to_ptr.vmem [resolvable:$true] %s14
      %17 = dma.hbm_to_vmem [thread:$0]  %s0, 128, %s15, [#allocation3]
    $region5: #{tpu_custom_call.1} parent=1 // pred_fallthru
      _
    // Predicated region
    $region6: #{tpu_custom_call.1} parent=1 // pred_check
      _
    $region7: #{tpu_custom_call.1} parent=1 // pred_check_branch
      %19 = sbr.rel (0) target = $region9
    $region8: #{tpu_custom_call.1} parent=1 // pred_region
      %20 = dma.done [#allocation3], 128
    $region9: #{tpu_custom_call.1} parent=1 // pred_fallthru
      _
    %v21 = vld [vmem:[#allocation2] sm:$0xff]
    %22 = vrot.lane.b32.xlu0 %v21, 1
    %v23 = vpop.permute.xlu0 %22
    %24 = vst [vmem:[#allocation5] sm:$0xff] %v23
    // Predicated region
    $region10: #{tpu_custom_call.1} parent=1 // pred_check
      _
    $region11: #{tpu_custom_call.1} parent=1 // pred_check_branch
      %26 = sbr.rel (0) target = $region13
    $region12: #{tpu_custom_call.1} parent=1 // pred_region
      %s28 = ssub.s32 128, 128
      %29 = vsyncadd [#allocation4], %s28
      %s31 = sshll.u32 [#allocation5], 4
      %s32 = int_to_ptr.vmem [resolvable:$true] %s31
      %34 = dma.vmem_to_hbm [thread:$0]  %s32, 128, %s1, [#allocation4]
    $region13: #{tpu_custom_call.1} parent=1 // pred_fallthru
      _
    // Predicated region
    $region14: #{tpu_custom_call.1} parent=1 // pred_check
      _
    $region15: #{tpu_custom_call.1} parent=1 // pred_check_branch
      %36 = sbr.rel (0) target = $region17
    $region16: #{tpu_custom_call.1} parent=1 // pred_region
      %37 = dma.done [#allocation4], 128
    $region17: #{tpu_custom_call.1} parent=1 // pred_fallthru
      _
    %38 = vsyncpa [#allocation3], 1
    %39 = vsyncpa [#allocation4], 1

</llo_original>
